<compile_context>
chip_gen: v6e
topology: v6e:2x2x1
jax: 0.10.0
libtpu: 0.0.40
codegen_flags: <defaults>
</compile_context>

<pallas_src>
import functools

import jax
import jax.numpy as jnp
from jax.experimental import pallas as pl
from jax.experimental.pallas import tpu as pltpu


def _rrl_kernel(out_ref, cols_ref, tlog_ref, o_ref, acc_ref, *,
                n_valid, tn, tiles_per_par):
    p = pl.program_id(0)          # core-parallel batch split
    i = pl.program_id(1)          # sequential accumulation axis

    @pl.when(i == 0)
    def _init():
        acc_ref[...] = jnp.zeros_like(acc_ref)

    x = out_ref[...]              # [C, tn]  logits (classes on sublanes, samples on lanes)
    cols = cols_ref[...]          # [C, tn]  (T0 + (j+1)*corr)[:, t_j] per sample j
    logit_t = tlog_ref[...]       # [1, tn]  out_j[t_j] (pre-gathered in wrapper)

    # Stable logsumexp over classes (sublane axis).
    m = jnp.max(x, axis=0, keepdims=True)              # [1, tn]
    e = jnp.exp(x - m)                                 # [C, tn]
    s = jnp.sum(e, axis=0, keepdims=True)              # [1, tn]
    ce = m + jnp.log(s) - logit_t                      # per-sample cross entropy

    # beta = pro1/pro2 with the softmax denominator cancelled:
    #   pro1 = e_t/s, pro2 = sum(e*cols)/s  =>  beta = e_t / sum(e*cols)
    e_t = jnp.exp(logit_t - m)                         # [1, tn]
    denom = jnp.sum(e * cols, axis=0, keepdims=True)   # [1, tn]

    # Mask padded lanes via the global sample index.
    gidx = (p * tiles_per_par + i) * tn + jax.lax.broadcasted_iota(
        jnp.int32, (1, tn), 1)
    valid = gidx < n_valid
    denom = jnp.where(valid, denom, 1.0)               # avoid 0/0 on padded lanes
    acc_ref[...] += jnp.where(valid, (e_t / denom) * ce, 0.0)

    @pl.when(i == pl.num_programs(1) - 1)
    def _finalize():
        # One cross-lane reduce per core; the /N happens in the wrapper.
        o_ref[...] = jnp.broadcast_to(jnp.sum(acc_ref[...]), o_ref.shape)


def reweighting_revision_loss(out, T, correction, target, *, tn=None, num_par=2):
    """out: [N, C] f32, T/correction: [C, C] f32, target: [N] int. Returns [1] f32."""
    out = jnp.asarray(out, jnp.float32)
    T = jnp.asarray(T, jnp.float32)
    correction = jnp.asarray(correction, jnp.float32)
    target = jnp.asarray(target, jnp.int32)
    N, C = out.shape

    # --- wrapper-side gather + (j+1)-weight fold: ONE fused [C, N] stream ---
    w = jnp.arange(1, N + 1, dtype=jnp.float32)                      # sample j -> weight j+1
    cols = T[:, target] + correction[:, target] * w[None, :]         # [C, N]
    out_t = out.T                                                    # [C, N] lane-dense
    tlog = jnp.take_along_axis(out, target[:, None], axis=1).reshape(1, N)

    # --- adaptive lane tile: multiple of 128, ~1 MiB per stream tile ---
    if tn is None:
        tn = (1 << 20) // (4 * C) // 128 * 128
        tn = max(128, min(2048, tn))
    total_tiles = max(1, -(-N // tn))
    num_par = max(1, min(num_par, total_tiles))        # v7x: split batch over 2 TCs
    tiles_per_par = -(-total_tiles // num_par)
    n_pad = num_par * tiles_per_par * tn
    pad = n_pad - N
    if pad:
        out_t = jnp.pad(out_t, ((0, 0), (0, pad)))
        cols = jnp.pad(cols, ((0, 0), (0, pad)))
        tlog = jnp.pad(tlog, ((0, 0), (0, pad)))

    sample_spec = pl.BlockSpec((C, tn), lambda p, i: (0, p * tiles_per_par + i))
    tlog_spec = pl.BlockSpec((1, tn), lambda p, i: (0, p * tiles_per_par + i))
    kernel = functools.partial(_rrl_kernel, n_valid=N, tn=tn,
                               tiles_per_par=tiles_per_par)

    # Double-buffered stream residency; only raise the scoped-VMEM limit when
    # a very large class count actually needs it (keeps v5e 16 MiB default ok).
    stream_bytes = 2 * 2 * C * tn * 4 + 2 * 2 * tn * 4 + (tn + 8 * 128) * 4
    cp = dict(dimension_semantics=("parallel", "arbitrary"))
    if stream_bytes > (12 << 20):
        cp["vmem_limit_bytes"] = int(min(stream_bytes + (4 << 20), 56 << 20))

    partials = pl.pallas_call(
        kernel,
        out_shape=jax.ShapeDtypeStruct((num_par * 8, 128), jnp.float32),
        grid=(num_par, tiles_per_par),
        in_specs=[sample_spec, sample_spec, tlog_spec],
        out_specs=pl.BlockSpec((8, 128), lambda p, i: (p, 0)),
        scratch_shapes=[pltpu.VMEM((1, tn), jnp.float32)],
        compiler_params=pltpu.CompilerParams(**cp),
    )(out_t, cols, tlog)

    # TODO(synk): for v6e with small/moderate C, benchmark the resident-T MXU
    # variant (T/correction kept in VMEM, e@T per tile) which removes the
    # wrapper gather stream entirely; keep this gather path for large C / v7x.
    loss = jnp.sum(partials[::8, 0]) / jnp.float32(N)
    return loss.reshape(1)


def _reference(out, T, correction, target):
    # pure-JAX reference mirroring the PyTorch loop literally
    out = jnp.asarray(out, jnp.float32)
    sm = jax.nn.softmax(out, axis=1)
    lse = jax.nn.logsumexp(out, axis=1)
    N = out.shape[0]
    loss = 0.0
    Tcur = jnp.asarray(T, jnp.float32)
    for i in range(N):
        Tcur = Tcur + correction
        t = int(target[i])
        pro1 = sm[i, t]
        pro2 = (sm[i] @ Tcur)[t]
        ce = lse[i] - out[i, t]
        loss = loss + (pro1 / pro2) * ce
    return jnp.asarray([loss / N], dtype=jnp.float32)


if __name__ == "__main__":
    key = jax.random.PRNGKey(0)
    k1, k2, k3, k4, k5, k6, k7 = jax.random.split(key, 7)

    C = 10
    T = 0.9 * jnp.eye(C, dtype=jnp.float32) + 0.1 / C
    correction = 0.01 * jax.random.uniform(k2, (C, C), dtype=jnp.float32)

    # --- test 1: tiny batch, single tile ---
    N = 8
    out = jax.random.normal(k1, (N, C), dtype=jnp.float32)
    target = jax.random.randint(k3, (N,), 0, C, dtype=jnp.int32)
    loss = reweighting_revision_loss(out, T, correction, target)
    jax.block_until_ready(loss)
    ref = _reference(out, T, correction, target)
    assert jnp.allclose(loss, ref, rtol=1e-5, atol=1e-5), (loss, ref)

    # --- test 2: N not a multiple of anything (padding/mask path) ---
    N2 = 13
    out2 = jax.random.normal(k4, (N2, C), dtype=jnp.float32)
    target2 = jax.random.randint(k5, (N2,), 0, C, dtype=jnp.int32)
    loss2 = reweighting_revision_loss(out2, T, correction, target2)
    jax.block_until_ready(loss2)
    ref2 = _reference(out2, T, correction, target2)
    assert jnp.allclose(loss2, ref2, rtol=1e-5, atol=1e-5), (loss2, ref2)

    # --- tests 3/4: forced small tile -> multi-tile grid; exercises both the
    # core-parallel partial path (num_par=2) and multi-step accumulation
    # (num_par=1).  Looser rtol only because the *reference* accumulates T
    # sequentially in f32 (drift), while the kernel uses (j+1)*correction.
    N3 = 200
    out3 = jax.random.normal(k6, (N3, C), dtype=jnp.float32)
    target3 = jax.random.randint(k7, (N3,), 0, C, dtype=jnp.int32)
    ref3 = _reference(out3, T, correction, target3)
    loss3a = reweighting_revision_loss(out3, T, correction, target3, tn=128, num_par=2)
    jax.block_until_ready(loss3a)
    assert jnp.allclose(loss3a, ref3, rtol=2e-4, atol=1e-5), (loss3a, ref3)
    loss3b = reweighting_revision_loss(out3, T, correction, target3, tn=128, num_par=1)
    jax.block_until_ready(loss3b)
    assert jnp.allclose(loss3b, ref3, rtol=2e-4, atol=1e-5), (loss3b, ref3)

    print("KERNEL_OK")
</pallas_src>

<mosaic_0001>
module attributes {stable_mosaic.version = 11 : i64} {
  func.func @_rrl_kernel(%arg0: i32, %arg1: i32, %arg2: memref<10x2048xf32, #tpu.memory_space<vmem>>, %arg3: memref<10x2048xf32, #tpu.memory_space<vmem>>, %arg4: memref<1x2048xf32, #tpu.memory_space<vmem>>, %arg5: memref<8x128xf32, #tpu.memory_space<vmem>>, %arg6: memref<1x2048xf32, #tpu.memory_space<vmem>>) attributes {dimension_semantics = [#tpu.dimension_semantics<parallel>, #tpu.dimension_semantics<arbitrary>], iteration_bounds = array<i64: 1, 1>, scalar_prefetch = 0 : i64, scratch_operands = 1 : i64, tpu.core_type = #tpu.core_type<tc>, window_params = [{transform_indices = @transform_0, window_bounds = array<i64: 10, 2048>}, {transform_indices = @transform_1, window_bounds = array<i64: 10, 2048>}, {transform_indices = @transform_2, window_bounds = array<i64: 1, 2048>}, {transform_indices = @transform_3, window_bounds = array<i64: 8, 128>}]} {
    %c0_i32 = arith.constant 0 : i32
    %0 = arith.cmpi eq, %arg1, %c0_i32 : i32
    %1 = arith.extui %0 : i1 to i32
    %c0_i32_0 = arith.constant 0 : i32
    %2 = arith.cmpi ne, %1, %c0_i32_0 : i32
    scf.if %2 {
      %cst_16 = arith.constant 0.000000e+00 : f32
      %41 = vector.broadcast %cst_16 : f32 to vector<1x2048xf32>
      %c0_17 = arith.constant 0 : index
      %c0_18 = arith.constant 0 : index
      %42 = vector.load %arg6[%c0_17, %c0_18] : memref<1x2048xf32, #tpu.memory_space<vmem>>, vector<1x2048xf32>
      tpu.vector_store %arg6[%c0_17, %c0_18], %41 {strides = array<i32>} : memref<1x2048xf32, #tpu.memory_space<vmem>>, vector<1x2048xf32>,
    } else {
    }
    %c0 = arith.constant 0 : index
    %c0_1 = arith.constant 0 : index
    %3 = vector.load %arg2[%c0, %c0_1] : memref<10x2048xf32, #tpu.memory_space<vmem>>, vector<10x2048xf32>
    %c0_2 = arith.constant 0 : index
    %c0_3 = arith.constant 0 : index
    %4 = vector.load %arg3[%c0_2, %c0_3] : memref<10x2048xf32, #tpu.memory_space<vmem>>, vector<10x2048xf32>
    %c0_4 = arith.constant 0 : index
    %c0_5 = arith.constant 0 : index
    %5 = vector.load %arg4[%c0_4, %c0_5] : memref<1x2048xf32, #tpu.memory_space<vmem>>, vector<1x2048xf32>
    %cst = arith.constant dense<0xFF800000> : vector<2048xf32>
    %6 = vector.multi_reduction <maximumf>, %3, %cst [0] : vector<10x2048xf32> to vector<2048xf32>
    %7 = vector.shape_cast %6 : vector<2048xf32> to vector<1x2048xf32>
    %8 = vector.broadcast %7 : vector<1x2048xf32> to vector<10x2048xf32>
    %9 = arith.subf %3, %8 : vector<10x2048xf32>
    %10 = math.exp %9 : vector<10x2048xf32>
    %cst_6 = arith.constant dense<0.000000e+00> : vector<2048xf32>
    %11 = vector.multi_reduction <add>, %10, %cst_6 [0] : vector<10x2048xf32> to vector<2048xf32>
    %12 = vector.shape_cast %11 : vector<2048xf32> to vector<1x2048xf32>
    %13 = math.log %12 : vector<1x2048xf32>
    %14 = arith.addf %7, %13 : vector<1x2048xf32>
    %15 = arith.subf %14, %5 : vector<1x2048xf32>
    %16 = arith.subf %5, %7 : vector<1x2048xf32>
    %17 = math.exp %16 : vector<1x2048xf32>
    %18 = arith.mulf %10, %4 : vector<10x2048xf32>
    %cst_7 = arith.constant dense<0.000000e+00> : vector<2048xf32>
    %19 = vector.multi_reduction <add>, %18, %cst_7 [0] : vector<10x2048xf32> to vector<2048xf32>
    %20 = vector.shape_cast %19 : vector<2048xf32> to vector<1x2048xf32>
    %c1_i32 = arith.constant 1 : i32
    %21 = arith.muli %arg0, %c1_i32 : i32
    %22 = arith.addi %21, %arg1 : i32
    %c2048_i32 = arith.constant 2048 : i32
    %23 = arith.muli %22, %c2048_i32 : i32
    %24 = tpu.iota {dimensions = array<i32: 1>} : vector<1x2048xi32>
    %25 = vector.broadcast %23 : i32 to vector<1x2048xi32>
    %26 = arith.addi %25, %24 : vector<1x2048xi32>
    %c8_i32 = arith.constant 8 : i32
    %27 = vector.broadcast %c8_i32 : i32 to vector<1x2048xi32>
    %28 = arith.cmpi slt, %26, %27 : vector<1x2048xi32>
    %cst_8 = arith.constant 1.000000e+00 : f32
    %29 = vector.broadcast %cst_8 : f32 to vector<1x2048xf32>
    %30 = arith.select %28, %20, %29 : vector<1x2048xi1>, vector<1x2048xf32>
    %c0_9 = arith.constant 0 : index
    %c0_10 = arith.constant 0 : index
    %31 = vector.load %arg6[%c0_9, %c0_10] : memref<1x2048xf32, #tpu.memory_space<vmem>>, vector<1x2048xf32>
    %32 = arith.divf %17, %30 : vector<1x2048xf32>
    %33 = arith.mulf %32, %15 : vector<1x2048xf32>
    %cst_11 = arith.constant 0.000000e+00 : f32
    %34 = vector.broadcast %cst_11 : f32 to vector<1x2048xf32>
    %35 = arith.select %28, %33, %34 : vector<1x2048xi1>, vector<1x2048xf32>
    %36 = arith.addf %31, %35 : vector<1x2048xf32>
    %c0_12 = arith.constant 0 : index
    %c0_13 = arith.constant 0 : index
    %37 = vector.load %arg6[%c0_12, %c0_13] : memref<1x2048xf32, #tpu.memory_space<vmem>>, vector<1x2048xf32>
    tpu.vector_store %arg6[%c0_12, %c0_13], %36 {strides = array<i32>} : memref<1x2048xf32, #tpu.memory_space<vmem>>, vector<1x2048xf32>,
    %c0_i32_14 = arith.constant 0 : i32
    %38 = arith.cmpi eq, %arg1, %c0_i32_14 : i32
    %39 = arith.extui %38 : i1 to i32
    %c0_i32_15 = arith.constant 0 : i32
    %40 = arith.cmpi ne, %39, %c0_i32_15 : i32
    scf.if %40 {
      %c0_16 = arith.constant 0 : index
      %c0_17 = arith.constant 0 : index
      %41 = vector.load %arg6[%c0_16, %c0_17] : memref<1x2048xf32, #tpu.memory_space<vmem>>, vector<1x2048xf32>
      %42 = vector.shape_cast %41 : vector<1x2048xf32> to vector<1x1x2048xf32>
      %cst_18 = arith.constant dense<0.000000e+00> : vector<1xf32>
      %43 = vector.multi_reduction <add>, %42, %cst_18 [1, 2] : vector<1x1x2048xf32> to vector<1xf32>
      %44 = vector.shape_cast %43 : vector<1xf32> to vector<1x1x1xf32>
      %45 = vector.extract %44[0, 0, 0] : f32 from vector<1x1x1xf32>
      %46 = vector.broadcast %45 : f32 to vector<8x128xf32>
      %c0_19 = arith.constant 0 : index
      %c0_20 = arith.constant 0 : index
      %47 = vector.load %arg5[%c0_19, %c0_20] : memref<8x128xf32, #tpu.memory_space<vmem>>, vector<8x128xf32>
      tpu.vector_store %arg5[%c0_19, %c0_20], %46 {strides = array<i32>} : memref<8x128xf32, #tpu.memory_space<vmem>>, vector<8x128xf32>,
    } else {
    }
    return
  }
  func.func @transform_0(%arg0: i32, %arg1: i32) -> (i32, i32) {
    %c1_i32 = arith.constant 1 : i32
    %0 = arith.muli %arg0, %c1_i32 : i32
    %1 = arith.addi %0, %arg1 : i32
    %c0_i32 = arith.constant 0 : i32
    %c0_i32_0 = arith.constant 0 : i32
    return %c0_i32, %1 : i32, i32
  }
  func.func @transform_1(%arg0: i32, %arg1: i32) -> (i32, i32) {
    %c1_i32 = arith.constant 1 : i32
    %0 = arith.muli %arg0, %c1_i32 : i32
    %1 = arith.addi %0, %arg1 : i32
    %c0_i32 = arith.constant 0 : i32
    %c0_i32_0 = arith.constant 0 : i32
    return %c0_i32, %1 : i32, i32
  }
  func.func @transform_2(%arg0: i32, %arg1: i32) -> (i32, i32) {
    %c1_i32 = arith.constant 1 : i32
    %0 = arith.muli %arg0, %c1_i32 : i32
    %1 = arith.addi %0, %arg1 : i32
    %c0_i32 = arith.constant 0 : i32
    %c0_i32_0 = arith.constant 0 : i32
    return %c0_i32, %1 : i32, i32
  }
  func.func @transform_3(%arg0: i32, %arg1: i32) -> (i32, i32) {
    %c0_i32 = arith.constant 0 : i32
    %c0_i32_0 = arith.constant 0 : i32
    return %arg0, %c0_i32 : i32, i32
  }
}

</mosaic_0001>

<llo_original>
// kernel: tpu_custom_call.1
$region0: #{tpu_custom_call.1}
  #allocation0 [shape = 'u32[]', space=smem, size = 0x4, offset = 0x4, fixed_abs, tag = 'smem constant byte address 0x4 - core index']
  #allocation1 [shape = 'u32[144,128]{1,0:T(1,128)}', space=vmem, size = 0x12000, scoped, tag = 'internal scratch']
  #allocation2 [shape = 'f32[1,2048]{1,0:T(1,128)}', space=vmem, size = 0x2000, scoped, tag = 'scratch operand']
  %s0 = inlined_call_operand.hbm [shape: f32[10,2048], index: 0, kind: input, shape index: {}]
  %s1 = inlined_call_operand.hbm [shape: f32[10,2048], index: 1, kind: input, shape index: {}]
  %s2 = inlined_call_operand.hbm [shape: f32[1,2048], index: 2, kind: input, shape index: {}]
  %s3 = inlined_call_operand.hbm [shape: f32[8,128], index: 3, kind: output, shape index: {}]
  %s4 = sld [smem:[#allocation0]]
  $region42: #{tpu_custom_call.1} parent=0
    _
  %s6 = ssub.s32 1, %s4
  %s7 = scalar_select 0, %s6, %s4
  $region1: #{tpu_custom_call.1} parent=0
    #allocation3 [shape = 'u8[131072]{0}', space=vmem, size = 0x20000, scoped, tag = 'input window, operand 0, single buffered']
    #allocation4 [shape = 's32[1]{0}', space=sflag, size = 0x4, scoped, tag = 'scoped memory for tpu_custom_call.1']
    #allocation5 [shape = 's32[1]{0}', space=sflag, size = 0x4, scoped, tag = 'scoped memory for tpu_custom_call.1']
    #allocation6 [shape = 'u8[131072]{0}', space=vmem, size = 0x20000, scoped, tag = 'input window, operand 1, single buffered']
    #allocation7 [shape = 's32[1]{0}', space=sflag, size = 0x4, scoped, tag = 'scoped memory for tpu_custom_call.1']
    #allocation8 [shape = 'u8[8192]{0}', space=vmem, size = 0x2000, scoped, tag = 'input window, operand 2, single buffered']
    #allocation9 [shape = 'u8[4096]{0}', space=vmem, size = 0x1000, scoped, tag = 'output window, operand 0, single buffered']
    %8 = vsyncpa [#allocation4], 0
    %9 = vsyncpa [#allocation7], 0
    %10 = vsyncpa [#allocation5], 0
    // Predicated region
    $region2: #{tpu_custom_call.1} parent=1 // pred_check
      _
    $region3: #{tpu_custom_call.1} parent=1 // pred_check_branch
      %12 = sbr.rel (0) target = $region5
    $region4: #{tpu_custom_call.1} parent=1 // pred_region
      %s13 = sadd.s32 0, 0
      %s14 = smul.u32 16, %s13
      %s16 = ssub.s32 4096, 4096
      %17 = vsyncadd [#allocation4], %s16
      %s18 = smul.addr %s14, 128
      %s19 = scalar_lea.hbm %s0, %s18
      %s20 = sshll.u32 [#allocation3], 4
      %s21 = int_to_ptr.vmem [resolvable:$true] %s20
      %26 = dma.hbm_to_vmem [thread:$0]  %s19, 4096, %s21, [#allocation4], 2048, 2048, 128
    $region5: #{tpu_custom_call.1} parent=1 // pred_fallthru
      _
    // Predicated region
    $region6: #{tpu_custom_call.1} parent=1 // pred_check
      _
    $region7: #{tpu_custom_call.1} parent=1 // pred_check_branch
      %28 = sbr.rel (0) target = $region9
    $region8: #{tpu_custom_call.1} parent=1 // pred_region
      %s29 = sadd.s32 0, 0
      %s30 = smul.u32 16, %s29
      %s32 = ssub.s32 4096, 4096
      %33 = vsyncadd [#allocation7], %s32
      %s34 = smul.addr %s30, 128
      %s35 = scalar_lea.hbm %s1, %s34
      %s36 = sshll.u32 [#allocation6], 4
      %s37 = int_to_ptr.vmem [resolvable:$true] %s36
      %42 = dma.hbm_to_vmem [thread:$0]  %s35, 4096, %s37, [#allocation7], 2048, 2048, 128
    $region9: #{tpu_custom_call.1} parent=1 // pred_fallthru
      _
    // Predicated region
    $region10: #{tpu_custom_call.1} parent=1 // pred_check
      _
    $region11: #{tpu_custom_call.1} parent=1 // pred_check_branch
      %44 = sbr.rel (0) target = $region13
    $region12: #{tpu_custom_call.1} parent=1 // pred_region
      %s45 = sadd.s32 0, 0
      %s46 = smul.u32 16, %s45
      %s48 = ssub.s32 256, 256
      %49 = vsyncadd [#allocation7], %s48
      %s50 = smul.addr %s46, 16
      %s51 = scalar_lea.hbm %s2, %s50
      %s53 = sshll.u32 [#allocation8], 4
      %s54 = int_to_ptr.vmem [resolvable:$true] %s53
      %56 = dma.hbm_to_vmem [thread:$0]  %s51, 256, %s54, [#allocation7]
    $region13: #{tpu_custom_call.1} parent=1 // pred_fallthru
      _
    // Predicated region
    $region14: #{tpu_custom_call.1} parent=1 // pred_check
      _
    $region15: #{tpu_custom_call.1} parent=1 // pred_check_branch
      %58 = sbr.rel (0) target = $region17
    $region16: #{tpu_custom_call.1} parent=1 // pred_region
      %59 = dma.done [#allocation4], 4096
    $region17: #{tpu_custom_call.1} parent=1 // pred_fallthru
      _
    // Predicated region
    $region18: #{tpu_custom_call.1} parent=1 // pred_check
      _
    $region19: #{tpu_custom_call.1} parent=1 // pred_check_branch
      %61 = sbr.rel (0) target = $region21
    $region20: #{tpu_custom_call.1} parent=1 // pred_region
      %62 = dma.done [#allocation7], 4096
    $region21: #{tpu_custom_call.1} parent=1 // pred_fallthru
      _
    // Predicated region
    $region22: #{tpu_custom_call.1} parent=1 // pred_check
      _
    $region23: #{tpu_custom_call.1} parent=1 // pred_check_branch
      %64 = sbr.rel (0) target = $region25
    $region24: #{tpu_custom_call.1} parent=1 // pred_region
      %65 = dma.done [#allocation7], 256
    $region25: #{tpu_custom_call.1} parent=1 // pred_fallthru
      _
    %s66 = sadd.s32 0, 0
    %s67 = smul.u32 16, %s66
    %s68 = sadd.s32 0, 0
    %s69 = smul.u32 16, %s68
    %s70 = sadd.s32 0, 0
    %s71 = smul.u32 16, %s70
    %p72 = scmp.eq.s32.totalorder 0, 0
    // Predicated region
    $region26: #{tpu_custom_call.1} parent=1 // pred_check
      %p73 = pneg %p72
    $region27: #{tpu_custom_call.1} parent=1 // pred_check_branch
      %75 = sbr.rel (%p73) target = $region29
    $region28: #{tpu_custom_call.1} parent=1 // pred_region
      %76 = vst [vmem:[#allocation2] sm:$0xff] 0.0
      %77 = vst [vmem:[#allocation2 + $0x8] sm:$0xff] 0.0
    $region29: #{tpu_custom_call.1} parent=1 // pred_fallthru
      _
    %v78 = vld [vmem:[#allocation3] sm:$0xff]
    %v79 = vld [vmem:[#allocation3 + $0x8] sm:$0xff]
    %v80 = vld [vmem:[#allocation3 + $0x10] sm:$0xff]
    %v81 = vld [vmem:[#allocation3 + $0x18] sm:$0xff]
    %v82 = vld [vmem:[#allocation3 + $0x20] sm:$0xff]
    %v83 = vld [vmem:[#allocation3 + $0x28] sm:$0xff]
    %v84 = vld [vmem:[#allocation3 + $0x30] sm:$0xff]
    %v85 = vld [vmem:[#allocation3 + $0x38] sm:$0xff]
    %v86 = vld [vmem:[#allocation3 + $0x40] sm:$0xff]
    %v87 = vld [vmem:[#allocation3 + $0x48] sm:$0xff]
    %v88 = vld [vmem:[#allocation3 + $0x50] sm:$0xff]
    %v89 = vld [vmem:[#allocation3 + $0x58] sm:$0xff]
    %v90 = vld [vmem:[#allocation3 + $0x60] sm:$0xff]
    %v91 = vld [vmem:[#allocation3 + $0x68] sm:$0xff]
    %v92 = vld [vmem:[#allocation3 + $0x70] sm:$0xff]
    %v93 = vld [vmem:[#allocation3 + $0x78] sm:$0xff]
    %v94 = vld [vmem:[#allocation3 + $0x80] sm:$0x3]
    %v95 = vld [vmem:[#allocation3 + $0x88] sm:$0x3]
    %v96 = vld [vmem:[#allocation3 + $0x90] sm:$0x3]
    %v97 = vld [vmem:[#allocation3 + $0x98] sm:$0x3]
    %v98 = vld [vmem:[#allocation3 + $0xa0] sm:$0x3]
    %v99 = vld [vmem:[#allocation3 + $0xa8] sm:$0x3]
    %v100 = vld [vmem:[#allocation3 + $0xb0] sm:$0x3]
    %v101 = vld [vmem:[#allocation3 + $0xb8] sm:$0x3]
    %v102 = vld [vmem:[#allocation3 + $0xc0] sm:$0x3]
    %v103 = vld [vmem:[#allocation3 + $0xc8] sm:$0x3]
    %v104 = vld [vmem:[#allocation3 + $0xd0] sm:$0x3]
    %v105 = vld [vmem:[#allocation3 + $0xd8] sm:$0x3]
    %v106 = vld [vmem:[#allocation3 + $0xe0] sm:$0x3]
    %v107 = vld [vmem:[#allocation3 + $0xe8] sm:$0x3]
    %v108 = vld [vmem:[#allocation3 + $0xf0] sm:$0x3]
    %v109 = vld [vmem:[#allocation3 + $0xf8] sm:$0x3]
    %v110 = vld [vmem:[#allocation6] sm:$0xff]
    %v111 = vld [vmem:[#allocation6 + $0x8] sm:$0xff]
    %v112 = vld [vmem:[#allocation6 + $0x10] sm:$0xff]
    %v113 = vld [vmem:[#allocation6 + $0x18] sm:$0xff]
    %v114 = vld [vmem:[#allocation6 + $0x20] sm:$0xff]
    %v115 = vld [vmem:[#allocation6 + $0x28] sm:$0xff]
    %v116 = vld [vmem:[#allocation6 + $0x30] sm:$0xff]
    %v117 = vld [vmem:[#allocation6 + $0x38] sm:$0xff]
    %v118 = vld [vmem:[#allocation6 + $0x40] sm:$0xff]
    %v119 = vld [vmem:[#allocation6 + $0x48] sm:$0xff]
    %v120 = vld [vmem:[#allocation6 + $0x50] sm:$0xff]
    %v121 = vld [vmem:[#allocation6 + $0x58] sm:$0xff]
    %v122 = vld [vmem:[#allocation6 + $0x60] sm:$0xff]
    %v123 = vld [vmem:[#allocation6 + $0x68] sm:$0xff]
    %v124 = vld [vmem:[#allocation6 + $0x70] sm:$0xff]
    %v125 = vld [vmem:[#allocation6 + $0x78] sm:$0xff]
    %v126 = vld [vmem:[#allocation6 + $0x80] sm:$0x3]
    %v127 = vld [vmem:[#allocation6 + $0x88] sm:$0x3]
    %v128 = vld [vmem:[#allocation6 + $0x90] sm:$0x3]
    %v129 = vld [vmem:[#allocation6 + $0x98] sm:$0x3]
    %v130 = vld [vmem:[#allocation6 + $0xa0] sm:$0x3]
    %v131 = vld [vmem:[#allocation6 + $0xa8] sm:$0x3]
    %v132 = vld [vmem:[#allocation6 + $0xb0] sm:$0x3]
    %v133 = vld [vmem:[#allocation6 + $0xb8] sm:$0x3]
    %v134 = vld [vmem:[#allocation6 + $0xc0] sm:$0x3]
    %v135 = vld [vmem:[#allocation6 + $0xc8] sm:$0x3]
    %v136 = vld [vmem:[#allocation6 + $0xd0] sm:$0x3]
    %v137 = vld [vmem:[#allocation6 + $0xd8] sm:$0x3]
    %v138 = vld [vmem:[#allocation6 + $0xe0] sm:$0x3]
    %v139 = vld [vmem:[#allocation6 + $0xe8] sm:$0x3]
    %v140 = vld [vmem:[#allocation6 + $0xf0] sm:$0x3]
    %v141 = vld [vmem:[#allocation6 + $0xf8] sm:$0x3]
    %v142 = vld [vmem:[#allocation8] sm:$0xff]
    %v143 = vld [vmem:[#allocation8 + $0x8] sm:$0xff]
    %vm144 = vcmask 1041408
    %v145 = vsel %vm144, %v94, -inf
    %v146 = vmax.f32 %v78, %v145
    %v147 = vrot.slane %v146, 4
    %v148 = vmax.f32 %v146, %v147
    %v149 = vrot.slane %v148, 2
    %v150 = vmax.f32 %v148, %v149
    %v151 = vrot.slane %v150, 1
    %v152 = vmax.f32 %v150, %v151
    %v153 = vsel %vm144, %v95, -inf
    %v154 = vmax.f32 %v79, %v153
    %v155 = vrot.slane %v154, 4
    %v156 = vmax.f32 %v154, %v155
    %v157 = vrot.slane %v156, 2
    %v158 = vmax.f32 %v156, %v157
    %v159 = vrot.slane %v158, 1
    %v160 = vmax.f32 %v158, %v159
    %v161 = vsel %vm144, %v96, -inf
    %v162 = vmax.f32 %v80, %v161
    %v163 = vrot.slane %v162, 4
    %v164 = vmax.f32 %v162, %v163
    %v165 = vrot.slane %v164, 2
    %v166 = vmax.f32 %v164, %v165
    %v167 = vrot.slane %v166, 1
    %v168 = vmax.f32 %v166, %v167
    %v169 = vsel %vm144, %v97, -inf
    %v170 = vmax.f32 %v81, %v169
    %v171 = vrot.slane %v170, 4
    %v172 = vmax.f32 %v170, %v171
    %v173 = vrot.slane %v172, 2
    %v174 = vmax.f32 %v172, %v173
    %v175 = vrot.slane %v174, 1
    %v176 = vmax.f32 %v174, %v175
    %v177 = vsel %vm144, %v98, -inf
    %v178 = vmax.f32 %v82, %v177
    %v179 = vrot.slane %v178, 4
    %v180 = vmax.f32 %v178, %v179
    %v181 = vrot.slane %v180, 2
    %v182 = vmax.f32 %v180, %v181
    %v183 = vrot.slane %v182, 1
    %v184 = vmax.f32 %v182, %v183
    %v185 = vsel %vm144, %v99, -inf
    %v186 = vmax.f32 %v83, %v185
    %v187 = vrot.slane %v186, 4
    %v188 = vmax.f32 %v186, %v187
    %v189 = vrot.slane %v188, 2
    %v190 = vmax.f32 %v188, %v189
    %v191 = vrot.slane %v190, 1
    %v192 = vmax.f32 %v190, %v191
    %v193 = vsel %vm144, %v100, -inf
    %v194 = vmax.f32 %v84, %v193
    %v195 = vrot.slane %v194, 4
    %v196 = vmax.f32 %v194, %v195
    %v197 = vrot.slane %v196, 2
    %v198 = vmax.f32 %v196, %v197
    %v199 = vrot.slane %v198, 1
    %v200 = vmax.f32 %v198, %v199
    %v201 = vsel %vm144, %v101, -inf
    %v202 = vmax.f32 %v85, %v201
    %v203 = vrot.slane %v202, 4
    %v204 = vmax.f32 %v202, %v203
    %v205 = vrot.slane %v204, 2
    %v206 = vmax.f32 %v204, %v205
    %v207 = vrot.slane %v206, 1
    %v208 = vmax.f32 %v206, %v207
    %v209 = vsel %vm144, %v102, -inf
    %v210 = vmax.f32 %v86, %v209
    %v211 = vrot.slane %v210, 4
    %v212 = vmax.f32 %v210, %v211
    %v213 = vrot.slane %v212, 2
    %v214 = vmax.f32 %v212, %v213
    %v215 = vrot.slane %v214, 1
    %v216 = vmax.f32 %v214, %v215
    %v217 = vsel %vm144, %v103, -inf
    %v218 = vmax.f32 %v87, %v217
    %v219 = vrot.slane %v218, 4
    %v220 = vmax.f32 %v218, %v219
    %v221 = vrot.slane %v220, 2
    %v222 = vmax.f32 %v220, %v221
    %v223 = vrot.slane %v222, 1
    %v224 = vmax.f32 %v222, %v223
    %v225 = vsel %vm144, %v104, -inf
    %v226 = vmax.f32 %v88, %v225
    %v227 = vrot.slane %v226, 4
    %v228 = vmax.f32 %v226, %v227
    %v229 = vrot.slane %v228, 2
    %v230 = vmax.f32 %v228, %v229
    %v231 = vrot.slane %v230, 1
    %v232 = vmax.f32 %v230, %v231
    %v233 = vsel %vm144, %v105, -inf
    %v234 = vmax.f32 %v89, %v233
    %v235 = vrot.slane %v234, 4
    %v236 = vmax.f32 %v234, %v235
    %v237 = vrot.slane %v236, 2
    %v238 = vmax.f32 %v236, %v237
    %v239 = vrot.slane %v238, 1
    %v240 = vmax.f32 %v238, %v239
    %v241 = vsel %vm144, %v106, -inf
    %v242 = vmax.f32 %v90, %v241
    %v243 = vrot.slane %v242, 4
    %v244 = vmax.f32 %v242, %v243
    %v245 = vrot.slane %v244, 2
    %v246 = vmax.f32 %v244, %v245
    %v247 = vrot.slane %v246, 1
    %v248 = vmax.f32 %v246, %v247
    %v249 = vsel %vm144, %v107, -inf
    %v250 = vmax.f32 %v91, %v249
    %v251 = vrot.slane %v250, 4
    %v252 = vmax.f32 %v250, %v251
    %v253 = vrot.slane %v252, 2
    %v254 = vmax.f32 %v252, %v253
    %v255 = vrot.slane %v254, 1
    %v256 = vmax.f32 %v254, %v255
    %v257 = vsel %vm144, %v108, -inf
    %v258 = vmax.f32 %v92, %v257
    %v259 = vrot.slane %v258, 4
    %v260 = vmax.f32 %v258, %v259
    %v261 = vrot.slane %v260, 2
    %v262 = vmax.f32 %v260, %v261
    %v263 = vrot.slane %v262, 1
    %v264 = vmax.f32 %v262, %v263
    %v265 = vsel %vm144, %v109, -inf
    %v266 = vmax.f32 %v93, %v265
    %v267 = vrot.slane %v266, 4
    %v268 = vmax.f32 %v266, %v267
    %v269 = vrot.slane %v268, 2
    %v270 = vmax.f32 %v268, %v269
    %v271 = vrot.slane %v270, 1
    %v272 = vmax.f32 %v270, %v271
    %v273 = vsub.f32 %v78, %v152
    %v274 = vsub.f32 %v79, %v160
    %v275 = vsub.f32 %v80, %v168
    %v276 = vsub.f32 %v81, %v176
    %v277 = vsub.f32 %v82, %v184
    %v278 = vsub.f32 %v83, %v192
    %v279 = vsub.f32 %v84, %v200
    %v280 = vsub.f32 %v85, %v208
    %v281 = vsub.f32 %v86, %v216
    %v282 = vsub.f32 %v87, %v224
    %v283 = vsub.f32 %v88, %v232
    %v284 = vsub.f32 %v89, %v240
    %v285 = vsub.f32 %v90, %v248
    %v286 = vsub.f32 %v91, %v256
    %v287 = vsub.f32 %v92, %v264
    %v288 = vsub.f32 %v93, %v272
    %v289 = vsub.f32 %v94, %v152
    %v290 = vsub.f32 %v95, %v160
    %v291 = vsub.f32 %v96, %v168
    %v292 = vsub.f32 %v97, %v176
    %v293 = vsub.f32 %v98, %v184
    %v294 = vsub.f32 %v99, %v192
    %v295 = vsub.f32 %v100, %v200
    %v296 = vsub.f32 %v101, %v208
    %v297 = vsub.f32 %v102, %v216
    %v298 = vsub.f32 %v103, %v224
    %v299 = vsub.f32 %v104, %v232
    %v300 = vsub.f32 %v105, %v240
    %v301 = vsub.f32 %v106, %v248
    %v302 = vsub.f32 %v107, %v256
    %v303 = vsub.f32 %v108, %v264
    %v304 = vsub.f32 %v109, %v272
    %v305 = vmul.f32 %v273, 1.442695
    %v306 = vpow.pop %v305
    %v307 = vmul.f32 %v274, 1.442695
    %v308 = vpow.pop %v307
    %v309 = vmul.f32 %v275, 1.442695
    %v310 = vpow.pop %v309
    %v311 = vmul.f32 %v276, 1.442695
    %v312 = vpow.pop %v311
    %v313 = vmul.f32 %v277, 1.442695
    %v314 = vpow.pop %v313
    %v315 = vmul.f32 %v278, 1.442695
    %v316 = vpow.pop %v315
    %v317 = vmul.f32 %v279, 1.442695
    %v318 = vpow.pop %v317
    %v319 = vmul.f32 %v280, 1.442695
    %v320 = vpow.pop %v319
    %v321 = vmul.f32 %v281, 1.442695
    %v322 = vpow.pop %v321
    %v323 = vmul.f32 %v282, 1.442695
    %v324 = vpow.pop %v323
    %v325 = vmul.f32 %v283, 1.442695
    %v326 = vpow.pop %v325
    %v327 = vmul.f32 %v284, 1.442695
    %v328 = vpow.pop %v327
    %v329 = vmul.f32 %v285, 1.442695
    %v330 = vpow.pop %v329
    %v331 = vmul.f32 %v286, 1.442695
    %v332 = vpow.pop %v331
    %v333 = vmul.f32 %v287, 1.442695
    %v334 = vpow.pop %v333
    %v335 = vmul.f32 %v288, 1.442695
    %v336 = vpow.pop %v335
    %v337 = vmul.f32 %v289, 1.442695
    %v338 = vpow.pop %v337
    %v339 = vmul.f32 %v290, 1.442695
    %v340 = vpow.pop %v339
    %v341 = vmul.f32 %v291, 1.442695
    %v342 = vpow.pop %v341
    %v343 = vmul.f32 %v292, 1.442695
    %v344 = vpow.pop %v343
    %v345 = vmul.f32 %v293, 1.442695
    %v346 = vpow.pop %v345
    %v347 = vmul.f32 %v294, 1.442695
    %v348 = vpow.pop %v347
    %v349 = vmul.f32 %v295, 1.442695
    %v350 = vpow.pop %v349
    %v351 = vmul.f32 %v296, 1.442695
    %v352 = vpow.pop %v351
    %v353 = vmul.f32 %v297, 1.442695
    %v354 = vpow.pop %v353
    %v355 = vmul.f32 %v298, 1.442695
    %v356 = vpow.pop %v355
    %v357 = vmul.f32 %v299, 1.442695
    %v358 = vpow.pop %v357
    %v359 = vmul.f32 %v300, 1.442695
    %v360 = vpow.pop %v359
    %v361 = vmul.f32 %v301, 1.442695
    %v362 = vpow.pop %v361
    %v363 = vmul.f32 %v302, 1.442695
    %v364 = vpow.pop %v363
    %v365 = vmul.f32 %v303, 1.442695
    %v366 = vpow.pop %v365
    %v367 = vmul.f32 %v304, 1.442695
    %v368 = vpow.pop %v367
    %v369 = vsel %vm144, %v338, 0.0
    %v370 = vadd.f32 %v306, %v369
    %v371 = vrot.slane %v370, 4
    %v372 = vadd.f32 %v370, %v371
    %v373 = vrot.slane %v372, 2
    %v374 = vadd.f32 %v372, %v373
    %v375 = vrot.slane %v374, 1
    %v376 = vadd.f32 %v374, %v375
    %v377 = vsel %vm144, %v340, 0.0
    %v378 = vadd.f32 %v308, %v377
    %v379 = vrot.slane %v378, 4
    %v380 = vadd.f32 %v378, %v379
    %v381 = vrot.slane %v380, 2
    %v382 = vadd.f32 %v380, %v381
    %v383 = vrot.slane %v382, 1
    %v384 = vadd.f32 %v382, %v383
    %v385 = vsel %vm144, %v342, 0.0
    %v386 = vadd.f32 %v310, %v385
    %v387 = vrot.slane %v386, 4
    %v388 = vadd.f32 %v386, %v387
    %v389 = vrot.slane %v388, 2
    %v390 = vadd.f32 %v388, %v389
    %v391 = vrot.slane %v390, 1
    %v392 = vadd.f32 %v390, %v391
    %v393 = vsel %vm144, %v344, 0.0
    %v394 = vadd.f32 %v312, %v393
    %v395 = vrot.slane %v394, 4
    %v396 = vadd.f32 %v394, %v395
    %v397 = vrot.slane %v396, 2
    %v398 = vadd.f32 %v396, %v397
    %v399 = vrot.slane %v398, 1
    %v400 = vadd.f32 %v398, %v399
    %v401 = vsel %vm144, %v346, 0.0
    %v402 = vadd.f32 %v314, %v401
    %v403 = vrot.slane %v402, 4
    %v404 = vadd.f32 %v402, %v403
    %v405 = vrot.slane %v404, 2
    %v406 = vadd.f32 %v404, %v405
    %v407 = vrot.slane %v406, 1
    %v408 = vadd.f32 %v406, %v407
    %v409 = vsel %vm144, %v348, 0.0
    %v410 = vadd.f32 %v316, %v409
    %v411 = vrot.slane %v410, 4
    %v412 = vadd.f32 %v410, %v411
    %v413 = vrot.slane %v412, 2
    %v414 = vadd.f32 %v412, %v413
    %v415 = vrot.slane %v414, 1
    %v416 = vadd.f32 %v414, %v415
    %v417 = vsel %vm144, %v350, 0.0
    %v418 = vadd.f32 %v318, %v417
    %v419 = vrot.slane %v418, 4
    %v420 = vadd.f32 %v418, %v419
    %v421 = vrot.slane %v420, 2
    %v422 = vadd.f32 %v420, %v421
    %v423 = vrot.slane %v422, 1
    %v424 = vadd.f32 %v422, %v423
    %v425 = vsel %vm144, %v352, 0.0
    %v426 = vadd.f32 %v320, %v425
    %v427 = vrot.slane %v426, 4
    %v428 = vadd.f32 %v426, %v427
    %v429 = vrot.slane %v428, 2
    %v430 = vadd.f32 %v428, %v429
    %v431 = vrot.slane %v430, 1
    %v432 = vadd.f32 %v430, %v431
    %v433 = vsel %vm144, %v354, 0.0
    %v434 = vadd.f32 %v322, %v433
    %v435 = vrot.slane %v434, 4
    %v436 = vadd.f32 %v434, %v435
    %v437 = vrot.slane %v436, 2
    %v438 = vadd.f32 %v436, %v437
    %v439 = vrot.slane %v438, 1
    %v440 = vadd.f32 %v438, %v439
    %v441 = vsel %vm144, %v356, 0.0
    %v442 = vadd.f32 %v324, %v441
    %v443 = vrot.slane %v442, 4
    %v444 = vadd.f32 %v442, %v443
    %v445 = vrot.slane %v444, 2
    %v446 = vadd.f32 %v444, %v445
    %v447 = vrot.slane %v446, 1
    %v448 = vadd.f32 %v446, %v447
    %v449 = vsel %vm144, %v358, 0.0
    %v450 = vadd.f32 %v326, %v449
    %v451 = vrot.slane %v450, 4
    %v452 = vadd.f32 %v450, %v451
    %v453 = vrot.slane %v452, 2
    %v454 = vadd.f32 %v452, %v453
    %v455 = vrot.slane %v454, 1
    %v456 = vadd.f32 %v454, %v455
    %v457 = vsel %vm144, %v360, 0.0
    %v458 = vadd.f32 %v328, %v457
    %v459 = vrot.slane %v458, 4
    %v460 = vadd.f32 %v458, %v459
    %v461 = vrot.slane %v460, 2
    %v462 = vadd.f32 %v460, %v461
    %v463 = vrot.slane %v462, 1
    %v464 = vadd.f32 %v462, %v463
    %v465 = vsel %vm144, %v362, 0.0
    %v466 = vadd.f32 %v330, %v465
    %v467 = vrot.slane %v466, 4
    %v468 = vadd.f32 %v466, %v467
    %v469 = vrot.slane %v468, 2
    %v470 = vadd.f32 %v468, %v469
    %v471 = vrot.slane %v470, 1
    %v472 = vadd.f32 %v470, %v471
    %v473 = vsel %vm144, %v364, 0.0
    %v474 = vadd.f32 %v332, %v473
    %v475 = vrot.slane %v474, 4
    %v476 = vadd.f32 %v474, %v475
    %v477 = vrot.slane %v476, 2
    %v478 = vadd.f32 %v476, %v477
    %v479 = vrot.slane %v478, 1
    %v480 = vadd.f32 %v478, %v479
    %v481 = vsel %vm144, %v366, 0.0
    %v482 = vadd.f32 %v334, %v481
    %v483 = vrot.slane %v482, 4
    %v484 = vadd.f32 %v482, %v483
    %v485 = vrot.slane %v484, 2
    %v486 = vadd.f32 %v484, %v485
    %v487 = vrot.slane %v486, 1
    %v488 = vadd.f32 %v486, %v487
    %v489 = vsel %vm144, %v368, 0.0
    %v490 = vadd.f32 %v336, %v489
    %v491 = vrot.slane %v490, 4
    %v492 = vadd.f32 %v490, %v491
    %v493 = vrot.slane %v492, 2
    %v494 = vadd.f32 %v492, %v493
    %v495 = vrot.slane %v494, 1
    %v496 = vadd.f32 %v494, %v495
    %v497 = vlog2.pop %v376
    %v498 = vmul.f32 %v497, 0.6931472
    %v499 = vlog2.pop %v384
    %v500 = vmul.f32 %v499, 0.6931472
    %v501 = vlog2.pop %v392
    %v502 = vmul.f32 %v501, 0.6931472
    %v503 = vlog2.pop %v400
    %v504 = vmul.f32 %v503, 0.6931472
    %v505 = vlog2.pop %v408
    %v506 = vmul.f32 %v505, 0.6931472
    %v507 = vlog2.pop %v416
    %v508 = vmul.f32 %v507, 0.6931472
    %v509 = vlog2.pop %v424
    %v510 = vmul.f32 %v509, 0.6931472
    %v511 = vlog2.pop %v432
    %v512 = vmul.f32 %v511, 0.6931472
    %v513 = vlog2.pop %v440
    %v514 = vmul.f32 %v513, 0.6931472
    %v515 = vlog2.pop %v448
    %v516 = vmul.f32 %v515, 0.6931472
    %v517 = vlog2.pop %v456
    %v518 = vmul.f32 %v517, 0.6931472
    %v519 = vlog2.pop %v464
    %v520 = vmul.f32 %v519, 0.6931472
    %v521 = vlog2.pop %v472
    %v522 = vmul.f32 %v521, 0.6931472
    %v523 = vlog2.pop %v480
    %v524 = vmul.f32 %v523, 0.6931472
    %v525 = vlog2.pop %v488
    %v526 = vmul.f32 %v525, 0.6931472
    %v527 = vlog2.pop %v496
    %v528 = vmul.f32 %v527, 0.6931472
    %v529 = vadd.f32 %v152, %v498
    %v530 = vadd.f32 %v160, %v500
    %v531 = vadd.f32 %v168, %v502
    %v532 = vadd.f32 %v176, %v504
    %v533 = vadd.f32 %v184, %v506
    %v534 = vadd.f32 %v192, %v508
    %v535 = vadd.f32 %v200, %v510
    %v536 = vadd.f32 %v208, %v512
    %v537 = vadd.f32 %v216, %v514
    %v538 = vadd.f32 %v224, %v516
    %v539 = vadd.f32 %v232, %v518
    %v540 = vadd.f32 %v240, %v520
    %v541 = vadd.f32 %v248, %v522
    %v542 = vadd.f32 %v256, %v524
    %v543 = vadd.f32 %v264, %v526
    %v544 = vadd.f32 %v272, %v528
    %v547 = vlaneseq
    %v548 = vshrl.u32 %v547, 7
    %v549 = vsub.s32 0, %v548
    %v550 = vrot.slane %v142, %v549
    %v551 = vlaneseq
    %v552 = vshrl.u32 %v551, 7
    %v553 = vsub.s32 1, %v552
    %v554 = vrot.slane %v142, %v553
    %v555 = vlaneseq
    %v556 = vshrl.u32 %v555, 7
    %v557 = vsub.s32 2, %v556
    %v558 = vrot.slane %v142, %v557
    %v559 = vlaneseq
    %v560 = vshrl.u32 %v559, 7
    %v561 = vsub.s32 3, %v560
    %v562 = vrot.slane %v142, %v561
    %v563 = vlaneseq
    %v564 = vshrl.u32 %v563, 7
    %v565 = vsub.s32 4, %v564
    %v566 = vrot.slane %v142, %v565
    %v567 = vlaneseq
    %v568 = vshrl.u32 %v567, 7
    %v569 = vsub.s32 5, %v568
    %v570 = vrot.slane %v142, %v569
    %v571 = vlaneseq
    %v572 = vshrl.u32 %v571, 7
    %v573 = vsub.s32 6, %v572
    %v574 = vrot.slane %v142, %v573
    %v575 = vlaneseq
    %v576 = vshrl.u32 %v575, 7
    %v577 = vsub.s32 7, %v576
    %v578 = vrot.slane %v142, %v577
    %v579 = vlaneseq
    %v580 = vshrl.u32 %v579, 7
    %v581 = vsub.s32 0, %v580
    %v582 = vrot.slane %v143, %v581
    %v583 = vlaneseq
    %v584 = vshrl.u32 %v583, 7
    %v585 = vsub.s32 1, %v584
    %v586 = vrot.slane %v143, %v585
    %v587 = vlaneseq
    %v588 = vshrl.u32 %v587, 7
    %v589 = vsub.s32 2, %v588
    %v590 = vrot.slane %v143, %v589
    %v591 = vlaneseq
    %v592 = vshrl.u32 %v591, 7
    %v593 = vsub.s32 3, %v592
    %v594 = vrot.slane %v143, %v593
    %v595 = vlaneseq
    %v596 = vshrl.u32 %v595, 7
    %v597 = vsub.s32 4, %v596
    %v598 = vrot.slane %v143, %v597
    %v599 = vlaneseq
    %v600 = vshrl.u32 %v599, 7
    %v601 = vsub.s32 5, %v600
    %v602 = vrot.slane %v143, %v601
    %v603 = vlaneseq
    %v604 = vshrl.u32 %v603, 7
    %v605 = vsub.s32 6, %v604
    %v606 = vrot.slane %v143, %v605
    %v607 = vlaneseq
    %v608 = vshrl.u32 %v607, 7
    %v609 = vsub.s32 7, %v608
    %v610 = vrot.slane %v143, %v609
    %v627 = vsub.f32 %v529, %v550
    %v628 = vsub.f32 %v530, %v554
    %v629 = vsub.f32 %v531, %v558
    %v630 = vsub.f32 %v532, %v562
    %v631 = vsub.f32 %v533, %v566
    %v632 = vsub.f32 %v534, %v570
    %v633 = vsub.f32 %v535, %v574
    %v634 = vsub.f32 %v536, %v578
    %v635 = vsub.f32 %v537, %v582
    %v636 = vsub.f32 %v538, %v586
    %v637 = vsub.f32 %v539, %v590
    %v638 = vsub.f32 %v540, %v594
    %v639 = vsub.f32 %v541, %v598
    %v640 = vsub.f32 %v542, %v602
    %v641 = vsub.f32 %v543, %v606
    %v642 = vsub.f32 %v544, %v610
    %v659 = vcombine.low %v152, %v160
    %v660 = vcombine.low %v168, %v176
    %v661 = vcombine.low %v184, %v192
    %v662 = vcombine.low %v200, %v208
    %v664 = vunpack.c.l.s4 1966171168
    %v665 = vunpack.c.0.s8 %v664
    %v666 = vlaneseq
    %v667 = vshrl.u32 %v666, 7
    %v668 = vsub.s32 %v665, %v667
    %v669 = vrot.slane %v659, %v668
    %v671 = vunpack.c.l.s4 1966171168
    %v672 = vunpack.c.0.s8 %v671
    %v673 = vlaneseq
    %v674 = vshrl.u32 %v673, 7
    %v675 = vsub.s32 %v672, %v674
    %v676 = vrot.slane %v660, %v675
    %v678 = vunpack.c.l.s4 1966171168
    %v679 = vunpack.c.0.s8 %v678
    %v680 = vlaneseq
    %v681 = vshrl.u32 %v680, 7
    %v682 = vsub.s32 %v679, %v681
    %v683 = vrot.slane %v661, %v682
    %v685 = vunpack.c.l.s4 1966171168
    %v686 = vunpack.c.0.s8 %v685
    %v687 = vlaneseq
    %v688 = vshrl.u32 %v687, 7
    %v689 = vsub.s32 %v686, %v688
    %v690 = vrot.slane %v662, %v689
    %v691 = vcombine.low %v669, %v676
    %v692 = vcombine.low %v683, %v690
    %v694 = vunpack.c.l.s4 1966171168
    %v695 = vunpack.c.0.s8 %v694
    %v696 = vlaneseq
    %v697 = vshrl.u32 %v696, 7
    %v698 = vsub.s32 %v695, %v697
    %v699 = vrot.slane %v691, %v698
    %v701 = vunpack.c.l.s4 1966171168
    %v702 = vunpack.c.0.s8 %v701
    %v703 = vlaneseq
    %v704 = vshrl.u32 %v703, 7
    %v705 = vsub.s32 %v702, %v704
    %v706 = vrot.slane %v692, %v705
    %v707 = vcombine.low %v699, %v706
    %v708 = vcombine.low %v216, %v224
    %v709 = vcombine.low %v232, %v240
    %v710 = vcombine.low %v248, %v256
    %v711 = vcombine.low %v264, %v272
    %v713 = vunpack.c.l.s4 1966171168
    %v714 = vunpack.c.0.s8 %v713
    %v715 = vlaneseq
    %v716 = vshrl.u32 %v715, 7
    %v717 = vsub.s32 %v714, %v716
    %v718 = vrot.slane %v708, %v717
    %v720 = vunpack.c.l.s4 1966171168
    %v721 = vunpack.c.0.s8 %v720
    %v722 = vlaneseq
    %v723 = vshrl.u32 %v722, 7
    %v724 = vsub.s32 %v721, %v723
    %v725 = vrot.slane %v709, %v724
    %v727 = vunpack.c.l.s4 1966171168
    %v728 = vunpack.c.0.s8 %v727
    %v729 = vlaneseq
    %v730 = vshrl.u32 %v729, 7
    %v731 = vsub.s32 %v728, %v730
    %v732 = vrot.slane %v710, %v731
    %v734 = vunpack.c.l.s4 1966171168
    %v735 = vunpack.c.0.s8 %v734
    %v736 = vlaneseq
    %v737 = vshrl.u32 %v736, 7
    %v738 = vsub.s32 %v735, %v737
    %v739 = vrot.slane %v711, %v738
    %v740 = vcombine.low %v718, %v725
    %v741 = vcombine.low %v732, %v739
    %v743 = vunpack.c.l.s4 1966171168
    %v744 = vunpack.c.0.s8 %v743
    %v745 = vlaneseq
    %v746 = vshrl.u32 %v745, 7
    %v747 = vsub.s32 %v744, %v746
    %v748 = vrot.slane %v740, %v747
    %v750 = vunpack.c.l.s4 1966171168
    %v751 = vunpack.c.0.s8 %v750
    %v752 = vlaneseq
    %v753 = vshrl.u32 %v752, 7
    %v754 = vsub.s32 %v751, %v753
    %v755 = vrot.slane %v741, %v754
    %v756 = vcombine.low %v748, %v755
    %v759 = vsub.f32 %v142, %v707
    %v760 = vsub.f32 %v143, %v756
    %v761 = vmul.f32 %v759, 1.442695
    %v762 = vpow.pop %v761
    %v763 = vmul.f32 %v760, 1.442695
    %v764 = vpow.pop %v763
    %v765 = vmul.f32 %v306, %v110
    %v766 = vmul.f32 %v308, %v111
    %v767 = vmul.f32 %v310, %v112
    %v768 = vmul.f32 %v312, %v113
    %v769 = vmul.f32 %v314, %v114
    %v770 = vmul.f32 %v316, %v115
    %v771 = vmul.f32 %v318, %v116
    %v772 = vmul.f32 %v320, %v117
    %v773 = vmul.f32 %v322, %v118
    %v774 = vmul.f32 %v324, %v119
    %v775 = vmul.f32 %v326, %v120
    %v776 = vmul.f32 %v328, %v121
    %v777 = vmul.f32 %v330, %v122
    %v778 = vmul.f32 %v332, %v123
    %v779 = vmul.f32 %v334, %v124
    %v780 = vmul.f32 %v336, %v125
    %v781 = vmul.f32 %v338, %v126
    %v782 = vmul.f32 %v340, %v127
    %v783 = vmul.f32 %v342, %v128
    %v784 = vmul.f32 %v344, %v129
    %v785 = vmul.f32 %v346, %v130
    %v786 = vmul.f32 %v348, %v131
    %v787 = vmul.f32 %v350, %v132
    %v788 = vmul.f32 %v352, %v133
    %v789 = vmul.f32 %v354, %v134
    %v790 = vmul.f32 %v356, %v135
    %v791 = vmul.f32 %v358, %v136
    %v792 = vmul.f32 %v360, %v137
    %v793 = vmul.f32 %v362, %v138
    %v794 = vmul.f32 %v364, %v139
    %v795 = vmul.f32 %v366, %v140
    %v796 = vmul.f32 %v368, %v141
    %v797 = vsel %vm144, %v781, 0.0
    %v798 = vadd.f32 %v765, %v797
    %v799 = vrot.slane %v798, 4
    %v800 = vadd.f32 %v798, %v799
    %v801 = vrot.slane %v800, 2
    %v802 = vadd.f32 %v800, %v801
    %v803 = vrot.slane %v802, 1
    %v804 = vadd.f32 %v802, %v803
    %v805 = vsel %vm144, %v782, 0.0
    %v806 = vadd.f32 %v766, %v805
    %v807 = vrot.slane %v806, 4
    %v808 = vadd.f32 %v806, %v807
    %v809 = vrot.slane %v808, 2
    %v810 = vadd.f32 %v808, %v809
    %v811 = vrot.slane %v810, 1
    %v812 = vadd.f32 %v810, %v811
    %v813 = vsel %vm144, %v783, 0.0
    %v814 = vadd.f32 %v767, %v813
    %v815 = vrot.slane %v814, 4
    %v816 = vadd.f32 %v814, %v815
    %v817 = vrot.slane %v816, 2
    %v818 = vadd.f32 %v816, %v817
    %v819 = vrot.slane %v818, 1
    %v820 = vadd.f32 %v818, %v819
    %v821 = vsel %vm144, %v784, 0.0
    %v822 = vadd.f32 %v768, %v821
    %v823 = vrot.slane %v822, 4
    %v824 = vadd.f32 %v822, %v823
    %v825 = vrot.slane %v824, 2
    %v826 = vadd.f32 %v824, %v825
    %v827 = vrot.slane %v826, 1
    %v828 = vadd.f32 %v826, %v827
    %v829 = vsel %vm144, %v785, 0.0
    %v830 = vadd.f32 %v769, %v829
    %v831 = vrot.slane %v830, 4
    %v832 = vadd.f32 %v830, %v831
    %v833 = vrot.slane %v832, 2
    %v834 = vadd.f32 %v832, %v833
    %v835 = vrot.slane %v834, 1
    %v836 = vadd.f32 %v834, %v835
    %v837 = vsel %vm144, %v786, 0.0
    %v838 = vadd.f32 %v770, %v837
    %v839 = vrot.slane %v838, 4
    %v840 = vadd.f32 %v838, %v839
    %v841 = vrot.slane %v840, 2
    %v842 = vadd.f32 %v840, %v841
    %v843 = vrot.slane %v842, 1
    %v844 = vadd.f32 %v842, %v843
    %v845 = vsel %vm144, %v787, 0.0
    %v846 = vadd.f32 %v771, %v845
    %v847 = vrot.slane %v846, 4
    %v848 = vadd.f32 %v846, %v847
    %v849 = vrot.slane %v848, 2
    %v850 = vadd.f32 %v848, %v849
    %v851 = vrot.slane %v850, 1
    %v852 = vadd.f32 %v850, %v851
    %v853 = vsel %vm144, %v788, 0.0
    %v854 = vadd.f32 %v772, %v853
    %v855 = vrot.slane %v854, 4
    %v856 = vadd.f32 %v854, %v855
    %v857 = vrot.slane %v856, 2
    %v858 = vadd.f32 %v856, %v857
    %v859 = vrot.slane %v858, 1
    %v860 = vadd.f32 %v858, %v859
    %v861 = vsel %vm144, %v789, 0.0
    %v862 = vadd.f32 %v773, %v861
    %v863 = vrot.slane %v862, 4
    %v864 = vadd.f32 %v862, %v863
    %v865 = vrot.slane %v864, 2
    %v866 = vadd.f32 %v864, %v865
    %v867 = vrot.slane %v866, 1
    %v868 = vadd.f32 %v866, %v867
    %v869 = vsel %vm144, %v790, 0.0
    %v870 = vadd.f32 %v774, %v869
    %v871 = vrot.slane %v870, 4
    %v872 = vadd.f32 %v870, %v871
    %v873 = vrot.slane %v872, 2
    %v874 = vadd.f32 %v872, %v873
    %v875 = vrot.slane %v874, 1
    %v876 = vadd.f32 %v874, %v875
    %v877 = vsel %vm144, %v791, 0.0
    %v878 = vadd.f32 %v775, %v877
    %v879 = vrot.slane %v878, 4
    %v880 = vadd.f32 %v878, %v879
    %v881 = vrot.slane %v880, 2
    %v882 = vadd.f32 %v880, %v881
    %v883 = vrot.slane %v882, 1
    %v884 = vadd.f32 %v882, %v883
    %v885 = vsel %vm144, %v792, 0.0
    %v886 = vadd.f32 %v776, %v885
    %v887 = vrot.slane %v886, 4
    %v888 = vadd.f32 %v886, %v887
    %v889 = vrot.slane %v888, 2
    %v890 = vadd.f32 %v888, %v889
    %v891 = vrot.slane %v890, 1
    %v892 = vadd.f32 %v890, %v891
    %v893 = vsel %vm144, %v793, 0.0
    %v894 = vadd.f32 %v777, %v893
    %v895 = vrot.slane %v894, 4
    %v896 = vadd.f32 %v894, %v895
    %v897 = vrot.slane %v896, 2
    %v898 = vadd.f32 %v896, %v897
    %v899 = vrot.slane %v898, 1
    %v900 = vadd.f32 %v898, %v899
    %v901 = vsel %vm144, %v794, 0.0
    %v902 = vadd.f32 %v778, %v901
    %v903 = vrot.slane %v902, 4
    %v904 = vadd.f32 %v902, %v903
    %v905 = vrot.slane %v904, 2
    %v906 = vadd.f32 %v904, %v905
    %v907 = vrot.slane %v906, 1
    %v908 = vadd.f32 %v906, %v907
    %v909 = vsel %vm144, %v795, 0.0
    %v910 = vadd.f32 %v779, %v909
    %v911 = vrot.slane %v910, 4
    %v912 = vadd.f32 %v910, %v911
    %v913 = vrot.slane %v912, 2
    %v914 = vadd.f32 %v912, %v913
    %v915 = vrot.slane %v914, 1
    %v916 = vadd.f32 %v914, %v915
    %v917 = vsel %vm144, %v796, 0.0
    %v918 = vadd.f32 %v780, %v917
    %v919 = vrot.slane %v918, 4
    %v920 = vadd.f32 %v918, %v919
    %v921 = vrot.slane %v920, 2
    %v922 = vadd.f32 %v920, %v921
    %v923 = vrot.slane %v922, 1
    %v924 = vadd.f32 %v922, %v923
    %s925 = sadd.s32 0, 0
    %s926 = smul.u32 %s925, 2048
    %v927 = vlaneseq
    %v928 = vand.u32 %v927, 127
    %v929 = vadd.s32 %v928, 128
    %v930 = vadd.s32 %v928, 256
    %v931 = vadd.s32 %v928, 384
    %v932 = vadd.s32 %v928, 512
    %v933 = vadd.s32 %v928, 640
    %v934 = vadd.s32 %v928, 768
    %v935 = vadd.s32 %v928, 896
    %v936 = vadd.s32 %v928, 1024
    %v937 = vadd.s32 %v928, 1152
    %v938 = vadd.s32 %v928, 1280
    %v939 = vadd.s32 %v928, 1408
    %v940 = vadd.s32 %v928, 1536
    %v941 = vadd.s32 %v928, 1664
    %v942 = vadd.s32 %v928, 1792
    %v943 = vadd.s32 %v928, 1920
    %v944 = vstv %s926
    %v945 = vadd.s32 %v944, %v928
    %v946 = vadd.s32 %v944, %v929
    %v947 = vadd.s32 %v944, %v930
    %v948 = vadd.s32 %v944, %v931
    %v949 = vadd.s32 %v944, %v932
    %v950 = vadd.s32 %v944, %v933
    %v951 = vadd.s32 %v944, %v934
    %v952 = vadd.s32 %v944, %v935
    %v953 = vadd.s32 %v944, %v936
    %v954 = vadd.s32 %v944, %v937
    %v955 = vadd.s32 %v944, %v938
    %v956 = vadd.s32 %v944, %v939
    %v957 = vadd.s32 %v944, %v940
    %v958 = vadd.s32 %v944, %v941
    %v959 = vadd.s32 %v944, %v942
    %v960 = vadd.s32 %v944, %v943
    %vm961 = vcmp.lt.s32.totalorder %v945, 8
    %vm962 = vcmp.lt.s32.totalorder %v946, 8
    %vm963 = vcmp.lt.s32.totalorder %v947, 8
    %vm964 = vcmp.lt.s32.totalorder %v948, 8
    %vm965 = vcmp.lt.s32.totalorder %v949, 8
    %vm966 = vcmp.lt.s32.totalorder %v950, 8
    %vm967 = vcmp.lt.s32.totalorder %v951, 8
    %vm968 = vcmp.lt.s32.totalorder %v952, 8
    %vm969 = vcmp.lt.s32.totalorder %v953, 8
    %vm970 = vcmp.lt.s32.totalorder %v954, 8
    %vm971 = vcmp.lt.s32.totalorder %v955, 8
    %vm972 = vcmp.lt.s32.totalorder %v956, 8
    %vm973 = vcmp.lt.s32.totalorder %v957, 8
    %vm974 = vcmp.lt.s32.totalorder %v958, 8
    %vm975 = vcmp.lt.s32.totalorder %v959, 8
    %vm976 = vcmp.lt.s32.totalorder %v960, 8
    %v977 = vsel %vm961, %v804, 1.0
    %v978 = vsel %vm962, %v812, 1.0
    %v979 = vsel %vm963, %v820, 1.0
    %v980 = vsel %vm964, %v828, 1.0
    %v981 = vsel %vm965, %v836, 1.0
    %v982 = vsel %vm966, %v844, 1.0
    %v983 = vsel %vm967, %v852, 1.0
    %v984 = vsel %vm968, %v860, 1.0
    %v985 = vsel %vm969, %v868, 1.0
    %v986 = vsel %vm970, %v876, 1.0
    %v987 = vsel %vm971, %v884, 1.0
    %v988 = vsel %vm972, %v892, 1.0
    %v989 = vsel %vm973, %v900, 1.0
    %v990 = vsel %vm974, %v908, 1.0
    %v991 = vsel %vm975, %v916, 1.0
    %v992 = vsel %vm976, %v924, 1.0
    %v993 = vld [vmem:[#allocation2] sm:$0xff]
    %v994 = vld [vmem:[#allocation2 + $0x8] sm:$0xff]
    %v1011 = vcombine.low %v977, %v978
    %v1012 = vcombine.low %v979, %v980
    %v1013 = vcombine.low %v981, %v982
    %v1014 = vcombine.low %v983, %v984
    %v1016 = vunpack.c.l.s4 1966171168
    %v1017 = vunpack.c.0.s8 %v1016
    %v1018 = vlaneseq
    %v1019 = vshrl.u32 %v1018, 7
    %v1020 = vsub.s32 %v1017, %v1019
    %v1021 = vrot.slane %v1011, %v1020
    %v1023 = vunpack.c.l.s4 1966171168
    %v1024 = vunpack.c.0.s8 %v1023
    %v1025 = vlaneseq
    %v1026 = vshrl.u32 %v1025, 7
    %v1027 = vsub.s32 %v1024, %v1026
    %v1028 = vrot.slane %v1012, %v1027
    %v1030 = vunpack.c.l.s4 1966171168
    %v1031 = vunpack.c.0.s8 %v1030
    %v1032 = vlaneseq
    %v1033 = vshrl.u32 %v1032, 7
    %v1034 = vsub.s32 %v1031, %v1033
    %v1035 = vrot.slane %v1013, %v1034
    %v1037 = vunpack.c.l.s4 1966171168
    %v1038 = vunpack.c.0.s8 %v1037
    %v1039 = vlaneseq
    %v1040 = vshrl.u32 %v1039, 7
    %v1041 = vsub.s32 %v1038, %v1040
    %v1042 = vrot.slane %v1014, %v1041
    %v1043 = vcombine.low %v1021, %v1028
    %v1044 = vcombine.low %v1035, %v1042
    %v1046 = vunpack.c.l.s4 1966171168
    %v1047 = vunpack.c.0.s8 %v1046
    %v1048 = vlaneseq
    %v1049 = vshrl.u32 %v1048, 7
    %v1050 = vsub.s32 %v1047, %v1049
    %v1051 = vrot.slane %v1043, %v1050
    %v1053 = vunpack.c.l.s4 1966171168
    %v1054 = vunpack.c.0.s8 %v1053
    %v1055 = vlaneseq
    %v1056 = vshrl.u32 %v1055, 7
    %v1057 = vsub.s32 %v1054, %v1056
    %v1058 = vrot.slane %v1044, %v1057
    %v1059 = vcombine.low %v1051, %v1058
    %v1060 = vcombine.low %v985, %v986
    %v1061 = vcombine.low %v987, %v988
    %v1062 = vcombine.low %v989, %v990
    %v1063 = vcombine.low %v991, %v992
    %v1065 = vunpack.c.l.s4 1966171168
    %v1066 = vunpack.c.0.s8 %v1065
    %v1067 = vlaneseq
    %v1068 = vshrl.u32 %v1067, 7
    %v1069 = vsub.s32 %v1066, %v1068
    %v1070 = vrot.slane %v1060, %v1069
    %v1072 = vunpack.c.l.s4 1966171168
    %v1073 = vunpack.c.0.s8 %v1072
    %v1074 = vlaneseq
    %v1075 = vshrl.u32 %v1074, 7
    %v1076 = vsub.s32 %v1073, %v1075
    %v1077 = vrot.slane %v1061, %v1076
    %v1079 = vunpack.c.l.s4 1966171168
    %v1080 = vunpack.c.0.s8 %v1079
    %v1081 = vlaneseq
    %v1082 = vshrl.u32 %v1081, 7
    %v1083 = vsub.s32 %v1080, %v1082
    %v1084 = vrot.slane %v1062, %v1083
    %v1086 = vunpack.c.l.s4 1966171168
    %v1087 = vunpack.c.0.s8 %v1086
    %v1088 = vlaneseq
    %v1089 = vshrl.u32 %v1088, 7
    %v1090 = vsub.s32 %v1087, %v1089
    %v1091 = vrot.slane %v1063, %v1090
    %v1092 = vcombine.low %v1070, %v1077
    %v1093 = vcombine.low %v1084, %v1091
    %v1095 = vunpack.c.l.s4 1966171168
    %v1096 = vunpack.c.0.s8 %v1095
    %v1097 = vlaneseq
    %v1098 = vshrl.u32 %v1097, 7
    %v1099 = vsub.s32 %v1096, %v1098
    %v1100 = vrot.slane %v1092, %v1099
    %v1102 = vunpack.c.l.s4 1966171168
    %v1103 = vunpack.c.0.s8 %v1102
    %v1104 = vlaneseq
    %v1105 = vshrl.u32 %v1104, 7
    %v1106 = vsub.s32 %v1103, %v1105
    %v1107 = vrot.slane %v1093, %v1106
    %v1108 = vcombine.low %v1100, %v1107
    %v1111 = vrcp.pop %v1059
    %v1112 = vmul.f32 %v762, %v1111
    %v1113 = vrcp.pop %v1108
    %v1114 = vmul.f32 %v764, %v1113
    %v1131 = vcombine.low %v627, %v628
    %v1132 = vcombine.low %v629, %v630
    %v1133 = vcombine.low %v631, %v632
    %v1134 = vcombine.low %v633, %v634
    %v1136 = vunpack.c.l.s4 1966171168
    %v1137 = vunpack.c.0.s8 %v1136
    %v1138 = vlaneseq
    %v1139 = vshrl.u32 %v1138, 7
    %v1140 = vsub.s32 %v1137, %v1139
    %v1141 = vrot.slane %v1131, %v1140
    %v1143 = vunpack.c.l.s4 1966171168
    %v1144 = vunpack.c.0.s8 %v1143
    %v1145 = vlaneseq
    %v1146 = vshrl.u32 %v1145, 7
    %v1147 = vsub.s32 %v1144, %v1146
    %v1148 = vrot.slane %v1132, %v1147
    %v1150 = vunpack.c.l.s4 1966171168
    %v1151 = vunpack.c.0.s8 %v1150
    %v1152 = vlaneseq
    %v1153 = vshrl.u32 %v1152, 7
    %v1154 = vsub.s32 %v1151, %v1153
    %v1155 = vrot.slane %v1133, %v1154
    %v1157 = vunpack.c.l.s4 1966171168
    %v1158 = vunpack.c.0.s8 %v1157
    %v1159 = vlaneseq
    %v1160 = vshrl.u32 %v1159, 7
    %v1161 = vsub.s32 %v1158, %v1160
    %v1162 = vrot.slane %v1134, %v1161
    %v1163 = vcombine.low %v1141, %v1148
    %v1164 = vcombine.low %v1155, %v1162
    %v1166 = vunpack.c.l.s4 1966171168
    %v1167 = vunpack.c.0.s8 %v1166
    %v1168 = vlaneseq
    %v1169 = vshrl.u32 %v1168, 7
    %v1170 = vsub.s32 %v1167, %v1169
    %v1171 = vrot.slane %v1163, %v1170
    %v1173 = vunpack.c.l.s4 1966171168
    %v1174 = vunpack.c.0.s8 %v1173
    %v1175 = vlaneseq
    %v1176 = vshrl.u32 %v1175, 7
    %v1177 = vsub.s32 %v1174, %v1176
    %v1178 = vrot.slane %v1164, %v1177
    %v1179 = vcombine.low %v1171, %v1178
    %v1180 = vcombine.low %v635, %v636
    %v1181 = vcombine.low %v637, %v638
    %v1182 = vcombine.low %v639, %v640
    %v1183 = vcombine.low %v641, %v642
    %v1185 = vunpack.c.l.s4 1966171168
    %v1186 = vunpack.c.0.s8 %v1185
    %v1187 = vlaneseq
    %v1188 = vshrl.u32 %v1187, 7
    %v1189 = vsub.s32 %v1186, %v1188
    %v1190 = vrot.slane %v1180, %v1189
    %v1192 = vunpack.c.l.s4 1966171168
    %v1193 = vunpack.c.0.s8 %v1192
    %v1194 = vlaneseq
    %v1195 = vshrl.u32 %v1194, 7
    %v1196 = vsub.s32 %v1193, %v1195
    %v1197 = vrot.slane %v1181, %v1196
    %v1199 = vunpack.c.l.s4 1966171168
    %v1200 = vunpack.c.0.s8 %v1199
    %v1201 = vlaneseq
    %v1202 = vshrl.u32 %v1201, 7
    %v1203 = vsub.s32 %v1200, %v1202
    %v1204 = vrot.slane %v1182, %v1203
    %v1206 = vunpack.c.l.s4 1966171168
    %v1207 = vunpack.c.0.s8 %v1206
    %v1208 = vlaneseq
    %v1209 = vshrl.u32 %v1208, 7
    %v1210 = vsub.s32 %v1207, %v1209
    %v1211 = vrot.slane %v1183, %v1210
    %v1212 = vcombine.low %v1190, %v1197
    %v1213 = vcombine.low %v1204, %v1211
    %v1215 = vunpack.c.l.s4 1966171168
    %v1216 = vunpack.c.0.s8 %v1215
    %v1217 = vlaneseq
    %v1218 = vshrl.u32 %v1217, 7
    %v1219 = vsub.s32 %v1216, %v1218
    %v1220 = vrot.slane %v1212, %v1219
    %v1222 = vunpack.c.l.s4 1966171168
    %v1223 = vunpack.c.0.s8 %v1222
    %v1224 = vlaneseq
    %v1225 = vshrl.u32 %v1224, 7
    %v1226 = vsub.s32 %v1223, %v1225
    %v1227 = vrot.slane %v1213, %v1226
    %v1228 = vcombine.low %v1220, %v1227
    %v1231 = vmul.f32 %v1112, %v1179
    %v1232 = vmul.f32 %v1114, %v1228
    %v1235 = vlaneseq
    %v1236 = vshrl.u32 %v1235, 7
    %v1237 = vsub.s32 0, %v1236
    %v1238 = vrot.slane %v1231, %v1237
    %v1239 = vlaneseq
    %v1240 = vshrl.u32 %v1239, 7
    %v1241 = vsub.s32 1, %v1240
    %v1242 = vrot.slane %v1231, %v1241
    %v1243 = vlaneseq
    %v1244 = vshrl.u32 %v1243, 7
    %v1245 = vsub.s32 2, %v1244
    %v1246 = vrot.slane %v1231, %v1245
    %v1247 = vlaneseq
    %v1248 = vshrl.u32 %v1247, 7
    %v1249 = vsub.s32 3, %v1248
    %v1250 = vrot.slane %v1231, %v1249
    %v1251 = vlaneseq
    %v1252 = vshrl.u32 %v1251, 7
    %v1253 = vsub.s32 4, %v1252
    %v1254 = vrot.slane %v1231, %v1253
    %v1255 = vlaneseq
    %v1256 = vshrl.u32 %v1255, 7
    %v1257 = vsub.s32 5, %v1256
    %v1258 = vrot.slane %v1231, %v1257
    %v1259 = vlaneseq
    %v1260 = vshrl.u32 %v1259, 7
    %v1261 = vsub.s32 6, %v1260
    %v1262 = vrot.slane %v1231, %v1261
    %v1263 = vlaneseq
    %v1264 = vshrl.u32 %v1263, 7
    %v1265 = vsub.s32 7, %v1264
    %v1266 = vrot.slane %v1231, %v1265
    %v1267 = vlaneseq
    %v1268 = vshrl.u32 %v1267, 7
    %v1269 = vsub.s32 0, %v1268
    %v1270 = vrot.slane %v1232, %v1269
    %v1271 = vlaneseq
    %v1272 = vshrl.u32 %v1271, 7
    %v1273 = vsub.s32 1, %v1272
    %v1274 = vrot.slane %v1232, %v1273
    %v1275 = vlaneseq
    %v1276 = vshrl.u32 %v1275, 7
    %v1277 = vsub.s32 2, %v1276
    %v1278 = vrot.slane %v1232, %v1277
    %v1279 = vlaneseq
    %v1280 = vshrl.u32 %v1279, 7
    %v1281 = vsub.s32 3, %v1280
    %v1282 = vrot.slane %v1232, %v1281
    %v1283 = vlaneseq
    %v1284 = vshrl.u32 %v1283, 7
    %v1285 = vsub.s32 4, %v1284
    %v1286 = vrot.slane %v1232, %v1285
    %v1287 = vlaneseq
    %v1288 = vshrl.u32 %v1287, 7
    %v1289 = vsub.s32 5, %v1288
    %v1290 = vrot.slane %v1232, %v1289
    %v1291 = vlaneseq
    %v1292 = vshrl.u32 %v1291, 7
    %v1293 = vsub.s32 6, %v1292
    %v1294 = vrot.slane %v1232, %v1293
    %v1295 = vlaneseq
    %v1296 = vshrl.u32 %v1295, 7
    %v1297 = vsub.s32 7, %v1296
    %v1298 = vrot.slane %v1232, %v1297
    %v1315 = vsel %vm961, %v1238, 0.0
    %v1316 = vsel %vm962, %v1242, 0.0
    %v1317 = vsel %vm963, %v1246, 0.0
    %v1318 = vsel %vm964, %v1250, 0.0
    %v1319 = vsel %vm965, %v1254, 0.0
    %v1320 = vsel %vm966, %v1258, 0.0
    %v1321 = vsel %vm967, %v1262, 0.0
    %v1322 = vsel %vm968, %v1266, 0.0
    %v1323 = vsel %vm969, %v1270, 0.0
    %v1324 = vsel %vm970, %v1274, 0.0
    %v1325 = vsel %vm971, %v1278, 0.0
    %v1326 = vsel %vm972, %v1282, 0.0
    %v1327 = vsel %vm973, %v1286, 0.0
    %v1328 = vsel %vm974, %v1290, 0.0
    %v1329 = vsel %vm975, %v1294, 0.0
    %v1330 = vsel %vm976, %v1298, 0.0
    %v1347 = vcombine.low %v1315, %v1316
    %v1348 = vcombine.low %v1317, %v1318
    %v1349 = vcombine.low %v1319, %v1320
    %v1350 = vcombine.low %v1321, %v1322
    %v1352 = vunpack.c.l.s4 1966171168
    %v1353 = vunpack.c.0.s8 %v1352
    %v1354 = vlaneseq
    %v1355 = vshrl.u32 %v1354, 7
    %v1356 = vsub.s32 %v1353, %v1355
    %v1357 = vrot.slane %v1347, %v1356
    %v1359 = vunpack.c.l.s4 1966171168
    %v1360 = vunpack.c.0.s8 %v1359
    %v1361 = vlaneseq
    %v1362 = vshrl.u32 %v1361, 7
    %v1363 = vsub.s32 %v1360, %v1362
    %v1364 = vrot.slane %v1348, %v1363
    %v1366 = vunpack.c.l.s4 1966171168
    %v1367 = vunpack.c.0.s8 %v1366
    %v1368 = vlaneseq
    %v1369 = vshrl.u32 %v1368, 7
    %v1370 = vsub.s32 %v1367, %v1369
    %v1371 = vrot.slane %v1349, %v1370
    %v1373 = vunpack.c.l.s4 1966171168
    %v1374 = vunpack.c.0.s8 %v1373
    %v1375 = vlaneseq
    %v1376 = vshrl.u32 %v1375, 7
    %v1377 = vsub.s32 %v1374, %v1376
    %v1378 = vrot.slane %v1350, %v1377
    %v1379 = vcombine.low %v1357, %v1364
    %v1380 = vcombine.low %v1371, %v1378
    %v1382 = vunpack.c.l.s4 1966171168
    %v1383 = vunpack.c.0.s8 %v1382
    %v1384 = vlaneseq
    %v1385 = vshrl.u32 %v1384, 7
    %v1386 = vsub.s32 %v1383, %v1385
    %v1387 = vrot.slane %v1379, %v1386
    %v1389 = vunpack.c.l.s4 1966171168
    %v1390 = vunpack.c.0.s8 %v1389
    %v1391 = vlaneseq
    %v1392 = vshrl.u32 %v1391, 7
    %v1393 = vsub.s32 %v1390, %v1392
    %v1394 = vrot.slane %v1380, %v1393
    %v1395 = vcombine.low %v1387, %v1394
    %v1396 = vcombine.low %v1323, %v1324
    %v1397 = vcombine.low %v1325, %v1326
    %v1398 = vcombine.low %v1327, %v1328
    %v1399 = vcombine.low %v1329, %v1330
    %v1401 = vunpack.c.l.s4 1966171168
    %v1402 = vunpack.c.0.s8 %v1401
    %v1403 = vlaneseq
    %v1404 = vshrl.u32 %v1403, 7
    %v1405 = vsub.s32 %v1402, %v1404
    %v1406 = vrot.slane %v1396, %v1405
    %v1408 = vunpack.c.l.s4 1966171168
    %v1409 = vunpack.c.0.s8 %v1408
    %v1410 = vlaneseq
    %v1411 = vshrl.u32 %v1410, 7
    %v1412 = vsub.s32 %v1409, %v1411
    %v1413 = vrot.slane %v1397, %v1412
    %v1415 = vunpack.c.l.s4 1966171168
    %v1416 = vunpack.c.0.s8 %v1415
    %v1417 = vlaneseq
    %v1418 = vshrl.u32 %v1417, 7
    %v1419 = vsub.s32 %v1416, %v1418
    %v1420 = vrot.slane %v1398, %v1419
    %v1422 = vunpack.c.l.s4 1966171168
    %v1423 = vunpack.c.0.s8 %v1422
    %v1424 = vlaneseq
    %v1425 = vshrl.u32 %v1424, 7
    %v1426 = vsub.s32 %v1423, %v1425
    %v1427 = vrot.slane %v1399, %v1426
    %v1428 = vcombine.low %v1406, %v1413
    %v1429 = vcombine.low %v1420, %v1427
    %v1431 = vunpack.c.l.s4 1966171168
    %v1432 = vunpack.c.0.s8 %v1431
    %v1433 = vlaneseq
    %v1434 = vshrl.u32 %v1433, 7
    %v1435 = vsub.s32 %v1432, %v1434
    %v1436 = vrot.slane %v1428, %v1435
    %v1438 = vunpack.c.l.s4 1966171168
    %v1439 = vunpack.c.0.s8 %v1438
    %v1440 = vlaneseq
    %v1441 = vshrl.u32 %v1440, 7
    %v1442 = vsub.s32 %v1439, %v1441
    %v1443 = vrot.slane %v1429, %v1442
    %v1444 = vcombine.low %v1436, %v1443
    %v1447 = vadd.f32 %v993, %v1395
    %v1448 = vadd.f32 %v994, %v1444
    %1449 = vst [vmem:[#allocation2] sm:$0xff] %v1447
    %1450 = vst [vmem:[#allocation2 + $0x8] sm:$0xff] %v1448
    // Predicated region
    $region30: #{tpu_custom_call.1} parent=1 // pred_check
      %p1451 = pneg %p72
    $region31: #{tpu_custom_call.1} parent=1 // pred_check_branch
      %1453 = sbr.rel (%p1451) target = $region33
    $region32: #{tpu_custom_call.1} parent=1 // pred_region
      %v1454 = vld [vmem:[#allocation2] sm:$0xff]
      %v1455 = vld [vmem:[#allocation2 + $0x8] sm:$0xff]
      %v1458 = vlaneseq
      %v1459 = vshrl.u32 %v1458, 7
      %v1460 = vsub.s32 0, %v1459
      %v1461 = vrot.slane %v1454, %v1460
      %v1462 = vlaneseq
      %v1463 = vshrl.u32 %v1462, 7
      %v1464 = vsub.s32 1, %v1463
      %v1465 = vrot.slane %v1454, %v1464
      %v1466 = vlaneseq
      %v1467 = vshrl.u32 %v1466, 7
      %v1468 = vsub.s32 2, %v1467
      %v1469 = vrot.slane %v1454, %v1468
      %v1470 = vlaneseq
      %v1471 = vshrl.u32 %v1470, 7
      %v1472 = vsub.s32 3, %v1471
      %v1473 = vrot.slane %v1454, %v1472
      %v1474 = vlaneseq
      %v1475 = vshrl.u32 %v1474, 7
      %v1476 = vsub.s32 4, %v1475
      %v1477 = vrot.slane %v1454, %v1476
      %v1478 = vlaneseq
      %v1479 = vshrl.u32 %v1478, 7
      %v1480 = vsub.s32 5, %v1479
      %v1481 = vrot.slane %v1454, %v1480
      %v1482 = vlaneseq
      %v1483 = vshrl.u32 %v1482, 7
      %v1484 = vsub.s32 6, %v1483
      %v1485 = vrot.slane %v1454, %v1484
      %v1486 = vlaneseq
      %v1487 = vshrl.u32 %v1486, 7
      %v1488 = vsub.s32 7, %v1487
      %v1489 = vrot.slane %v1454, %v1488
      %v1490 = vlaneseq
      %v1491 = vshrl.u32 %v1490, 7
      %v1492 = vsub.s32 0, %v1491
      %v1493 = vrot.slane %v1455, %v1492
      %v1494 = vlaneseq
      %v1495 = vshrl.u32 %v1494, 7
      %v1496 = vsub.s32 1, %v1495
      %v1497 = vrot.slane %v1455, %v1496
      %v1498 = vlaneseq
      %v1499 = vshrl.u32 %v1498, 7
      %v1500 = vsub.s32 2, %v1499
      %v1501 = vrot.slane %v1455, %v1500
      %v1502 = vlaneseq
      %v1503 = vshrl.u32 %v1502, 7
      %v1504 = vsub.s32 3, %v1503
      %v1505 = vrot.slane %v1455, %v1504
      %v1506 = vlaneseq
      %v1507 = vshrl.u32 %v1506, 7
      %v1508 = vsub.s32 4, %v1507
      %v1509 = vrot.slane %v1455, %v1508
      %v1510 = vlaneseq
      %v1511 = vshrl.u32 %v1510, 7
      %v1512 = vsub.s32 5, %v1511
      %v1513 = vrot.slane %v1455, %v1512
      %v1514 = vlaneseq
      %v1515 = vshrl.u32 %v1514, 7
      %v1516 = vsub.s32 6, %v1515
      %v1517 = vrot.slane %v1455, %v1516
      %v1518 = vlaneseq
      %v1519 = vshrl.u32 %v1518, 7
      %v1520 = vsub.s32 7, %v1519
      %v1521 = vrot.slane %v1455, %v1520
      %vm1538 = vcmask 1040384
      %v1539 = vsel %vm1538, %v1461, 0.0
      %v1540 = vsel %vm1538, %v1465, 0.0
      %v1541 = vadd.f32 %v1539, %v1540
      %v1542 = vsel %vm1538, %v1469, 0.0
      %v1543 = vadd.f32 %v1541, %v1542
      %v1544 = vsel %vm1538, %v1473, 0.0
      %v1545 = vadd.f32 %v1543, %v1544
      %v1546 = vsel %vm1538, %v1477, 0.0
      %v1547 = vadd.f32 %v1545, %v1546
      %v1548 = vsel %vm1538, %v1481, 0.0
      %v1549 = vadd.f32 %v1547, %v1548
      %v1550 = vsel %vm1538, %v1485, 0.0
      %v1551 = vadd.f32 %v1549, %v1550
      %v1552 = vsel %vm1538, %v1489, 0.0
      %v1553 = vadd.f32 %v1551, %v1552
      %v1554 = vsel %vm1538, %v1493, 0.0
      %v1555 = vadd.f32 %v1553, %v1554
      %v1556 = vsel %vm1538, %v1497, 0.0
      %v1557 = vadd.f32 %v1555, %v1556
      %v1558 = vsel %vm1538, %v1501, 0.0
      %v1559 = vadd.f32 %v1557, %v1558
      %v1560 = vsel %vm1538, %v1505, 0.0
      %v1561 = vadd.f32 %v1559, %v1560
      %v1562 = vsel %vm1538, %v1509, 0.0
      %v1563 = vadd.f32 %v1561, %v1562
      %v1564 = vsel %vm1538, %v1513, 0.0
      %v1565 = vadd.f32 %v1563, %v1564
      %v1566 = vsel %vm1538, %v1517, 0.0
      %v1567 = vadd.f32 %v1565, %v1566
      %v1568 = vsel %vm1538, %v1521, 0.0
      %v1569 = vadd.f32 %v1567, %v1568
      %1570 = vadd.xlane.f32.xlu0 %v1569
      %v1571 = vpop.xlane.xlu0 %1570
      %v1572 = vrot.slane %v1571, 4
      %v1573 = vadd.f32 %v1571, %v1572
      %v1574 = vrot.slane %v1573, 2
      %v1575 = vadd.f32 %v1573, %v1574
      %v1576 = vrot.slane %v1575, 1
      %v1577 = vadd.f32 %v1575, %v1576
      %s1578 = vtos %v1577
      %v1579 = vstv %s1578
      %1580 = vst [vmem:[#allocation9] sm:$0xff] %v1579
    $region33: #{tpu_custom_call.1} parent=1 // pred_fallthru
      _
    // Predicated region
    $region34: #{tpu_custom_call.1} parent=1 // pred_check
      _
    $region35: #{tpu_custom_call.1} parent=1 // pred_check_branch
      %1582 = sbr.rel (0) target = $region37
    $region36: #{tpu_custom_call.1} parent=1 // pred_region
      %s1584 = ssub.s32 128, 128
      %1585 = vsyncadd [#allocation5], %s1584
      %s1587 = sshll.u32 [#allocation9], 4
      %s1588 = int_to_ptr.vmem [resolvable:$true] %s1587
      %1590 = dma.vmem_to_hbm [thread:$0]  %s1588, 128, %s3, [#allocation5]
    $region37: #{tpu_custom_call.1} parent=1 // pred_fallthru
      _
    // Predicated region
    $region38: #{tpu_custom_call.1} parent=1 // pred_check
      _
    $region39: #{tpu_custom_call.1} parent=1 // pred_check_branch
      %1592 = sbr.rel (0) target = $region41
    $region40: #{tpu_custom_call.1} parent=1 // pred_region
      %1593 = dma.done [#allocation5], 128
    $region41: #{tpu_custom_call.1} parent=1 // pred_fallthru
      _
    %1594 = vsyncpa [#allocation4], 1
    %1595 = vsyncpa [#allocation7], 1
    %1596 = vsyncpa [#allocation5], 1

</llo_original>
